<compile_context>
chip_gen: v6e
topology: v6e:2x2x1
jax: 0.10.0
libtpu: 0.0.40
codegen_flags: <defaults>
</compile_context>

<pallas_src>
import jax
import jax.numpy as jnp
from jax.experimental import pallas as pl
from jax.experimental.pallas import tpu as pltpu


def _round_up(x, m):
    return ((x + m - 1) // m) * m


def _mlp_kernel(ue_ref, me_ref, w1u_ref, w1m_ref, b1_ref,
                w2_ref, b2_ref, w3_ref, b3_ref, o_ref):
    # ue/me: (TB, E) bf16      w1u/w1m: (E, 128) bf16
    # b1: (1, 128) f32         w2: (128, 64) bf16     b2: (1, 64) f32
    # w3: (1, 64) f32 (row)    b3: (1, 1) f32 in SMEM
    # o:  (TB, 1) f32

    # fc1: split-K over the (concat-free) user/movie halves. bf16 MXU, f32 acc.
    h1 = jnp.dot(ue_ref[...], w1u_ref[...], preferred_element_type=jnp.float32)
    h1 = h1 + jnp.dot(me_ref[...], w1m_ref[...],
                      preferred_element_type=jnp.float32)
    h1 = jnp.maximum(h1 + b1_ref[...], 0.0)            # relu(fc1), f32

    # fc2: bf16 MXU operands, f32 accumulation / bias / relu.
    h2 = jnp.dot(h1.astype(jnp.bfloat16), w2_ref[...],
                 preferred_element_type=jnp.float32)
    h2 = jnp.maximum(h2 + b2_ref[...], 0.0)             # relu(fc2), f32

    # fc3: (TB,64)@(64,1) would waste an MXU push -> VPU multiply + XLU reduce.
    h3 = jnp.sum(h2 * w3_ref[...], axis=-1, keepdims=True)  # (TB, 1) f32
    o_ref[...] = (h3 + b3_ref[0, 0]).astype(o_ref.dtype)


def mf_forward(user_ids, movie_ids, params):
    """Forward pass equivalent to MatrixFactorization.forward."""
    user_emb = params["user_embedding"]    # (num_users,  E) f32
    movie_emb = params["movie_embedding"]  # (num_movies, E) f32
    E = user_emb.shape[1]

    # Embedding gather (glue, plain JAX).  No concat: halves go in separately.
    ue = jnp.take(user_emb, user_ids, axis=0)    # (B, E)
    me = jnp.take(movie_emb, movie_ids, axis=0)  # (B, E)

    B = ue.shape[0]
    TB = min(256, _round_up(B, 8))               # batch tile (sublane-aligned)
    B_pad = _round_up(B, TB)
    if B_pad != B:
        pad = B_pad - B
        ue = jnp.pad(ue, ((0, pad), (0, 0)))
        me = jnp.pad(me, ((0, pad), (0, 0)))

    # bf16 for MXU operands -> halves activation + weight DMA traffic.
    ue = ue.astype(jnp.bfloat16)
    me = me.astype(jnp.bfloat16)

    w1 = params["w1"]                            # (2E, 128) f32
    w1u = w1[:E].astype(jnp.bfloat16)            # (E, 128) bf16
    w1m = w1[E:].astype(jnp.bfloat16)            # (E, 128) bf16
    b1 = params["b1"]                            # (1, 128) f32
    w2 = params["w2"].astype(jnp.bfloat16)       # (128, 64) bf16
    b2 = params["b2"]                            # (1, 64) f32
    w3 = params["w3"].reshape(1, 64)             # row vector for VPU broadcast
    b3 = params["b3"].reshape(1, 1)              # scalar -> SMEM

    n_tiles = B_pad // TB

    flops = 2 * B_pad * (2 * E * 128 + 128 * 64 + 64)
    bytes_accessed = (
        2 * B_pad * E * 2                         # ue + me (bf16)
        + (2 * E * 128 + 128 * 64) * 2            # w1, w2 (bf16)
        + (128 + 64 + 64 + 1) * 4                 # b1, b2, w3, b3 (f32)
        + B_pad * 4                               # output (f32)
    )

    out = pl.pallas_call(
        _mlp_kernel,
        out_shape=jax.ShapeDtypeStruct((B_pad, 1), jnp.float32),
        grid_spec=pl.GridSpec(
            grid=(n_tiles,),
            in_specs=[
                # streamed activation tiles
                pl.BlockSpec((TB, E), lambda i: (i, 0)),      # ue
                pl.BlockSpec((TB, E), lambda i: (i, 0)),      # me
                # weights/biases: constant block index -> VMEM-resident
                pl.BlockSpec((E, 128), lambda i: (0, 0)),     # w1 (user half)
                pl.BlockSpec((E, 128), lambda i: (0, 0)),     # w1 (movie half)
                pl.BlockSpec((1, 128), lambda i: (0, 0)),     # b1
                pl.BlockSpec((128, 64), lambda i: (0, 0)),    # w2
                pl.BlockSpec((1, 64), lambda i: (0, 0)),      # b2
                pl.BlockSpec((1, 64), lambda i: (0, 0)),      # w3 row
                pl.BlockSpec(memory_space=pltpu.MemorySpace.SMEM),  # b3 scalar
            ],
            out_specs=pl.BlockSpec((TB, 1), lambda i: (i, 0)),
        ),
        compiler_params=pltpu.CompilerParams(
            dimension_semantics=("parallel",),      # 2x on v7x, no-op v5e/v6e
            vmem_limit_bytes=32 * 1024 * 1024,      # fits v7x 64 MiB w/ headroom
        ),
        cost_estimate=pl.CostEstimate(
            flops=int(flops), transcendentals=0,
            bytes_accessed=int(bytes_accessed)),
    )(ue, me, w1u, w1m, b1, w2, b2, w3, b3)

    return out[:B]


def init_params(key, num_users, num_movies, embedding_size):
    """Deterministic init mirroring PyTorch defaults (N(0,1) embeddings,
    U(-1/sqrt(fan_in), 1/sqrt(fan_in)) linear layers). Weights stored as
    (in_features, out_features) so the kernel does x @ W + b (== x @ W.T + b
    for PyTorch's (out, in) layout)."""
    ks = jax.random.split(key, 8)
    E = embedding_size

    def lin(kw, kb, fan_in, fan_out):
        bound = 1.0 / jnp.sqrt(fan_in)
        w = jax.random.uniform(kw, (fan_in, fan_out), jnp.float32, -bound, bound)
        b = jax.random.uniform(kb, (1, fan_out), jnp.float32, -bound, bound)
        return w, b

    w1, b1 = lin(ks[2], ks[3], 2 * E, 128)
    w2, b2 = lin(ks[4], ks[5], 128, 64)
    w3, b3 = lin(ks[6], ks[7], 64, 1)

    return {
        "user_embedding": jax.random.normal(ks[0], (num_users, E), jnp.float32),
        "movie_embedding": jax.random.normal(ks[1], (num_movies, E), jnp.float32),
        "w1": w1, "b1": b1,
        "w2": w2, "b2": b2,
        "w3": w3, "b3": b3,
    }


if __name__ == "__main__":
    num_users, num_movies, embedding_size = 100, 200, 32
    batch = 8

    key = jax.random.PRNGKey(0)
    params = init_params(key, num_users, num_movies, embedding_size)

    k_u, k_m = jax.random.split(jax.random.PRNGKey(1))
    user_ids = jax.random.randint(k_u, (batch,), 0, num_users, dtype=jnp.int32)
    movie_ids = jax.random.randint(k_m, (batch,), 0, num_movies, dtype=jnp.int32)

    out = mf_forward(user_ids, movie_ids, params)
    jax.block_until_ready(out)
    assert out.shape == (batch, 1)

    # Reference 1: same math as the kernel (bf16 MXU operands, f32 accumulate).
    ue = jnp.take(params["user_embedding"], user_ids, axis=0)
    me = jnp.take(params["movie_embedding"], movie_ids, axis=0)
    x = jnp.concatenate([ue, me], axis=1)
    h = jnp.dot(x.astype(jnp.bfloat16), params["w1"].astype(jnp.bfloat16),
                preferred_element_type=jnp.float32) + params["b1"]
    h = jnp.maximum(h, 0.0)
    h = jnp.dot(h.astype(jnp.bfloat16), params["w2"].astype(jnp.bfloat16),
                preferred_element_type=jnp.float32) + params["b2"]
    h = jnp.maximum(h, 0.0)
    ref_bf16 = h @ params["w3"] + params["b3"]
    assert jnp.allclose(out, ref_bf16, atol=1e-3, rtol=1e-3)

    # Reference 2: full-f32 forward of the original module (loose tolerance
    # because the kernel uses bf16 MXU operands).
    h32 = jnp.maximum(x @ params["w1"] + params["b1"], 0.0)
    h32 = jnp.maximum(h32 @ params["w2"] + params["b2"], 0.0)
    ref_f32 = h32 @ params["w3"] + params["b3"]
    assert jnp.allclose(out, ref_f32, atol=5e-2, rtol=5e-2)

    print("KERNEL_OK")
</pallas_src>

<mosaic_0001>
module attributes {stable_mosaic.version = 11 : i64} {
  func.func @_mlp_kernel(%arg0: i32, %arg1: memref<8x32xbf16, #tpu.memory_space<vmem>>, %arg2: memref<8x32xbf16, #tpu.memory_space<vmem>>, %arg3: memref<32x128xbf16, #tpu.memory_space<vmem>>, %arg4: memref<32x128xbf16, #tpu.memory_space<vmem>>, %arg5: memref<1x128xf32, #tpu.memory_space<vmem>>, %arg6: memref<128x64xbf16, #tpu.memory_space<vmem>>, %arg7: memref<1x64xf32, #tpu.memory_space<vmem>>, %arg8: memref<1x64xf32, #tpu.memory_space<vmem>>, %arg9: memref<1x1xf32, #tpu.memory_space<smem>>, %arg10: memref<8x1xf32, #tpu.memory_space<vmem>>) attributes {dimension_semantics = [#tpu.dimension_semantics<parallel>], iteration_bounds = array<i64: 1>, scalar_prefetch = 0 : i64, scratch_operands = 0 : i64, tpu.core_type = #tpu.core_type<tc>, window_params = [{transform_indices = @transform_0, window_bounds = array<i64: 8, 32>}, {transform_indices = @transform_1, window_bounds = array<i64: 8, 32>}, {pipeline_mode = #tpu.pipeline_mode<synchronous>, transform_indices = @transform_2, window_bounds = array<i64: 32, 128>}, {pipeline_mode = #tpu.pipeline_mode<synchronous>, transform_indices = @transform_3, window_bounds = array<i64: 32, 128>}, {pipeline_mode = #tpu.pipeline_mode<synchronous>, transform_indices = @transform_4, window_bounds = array<i64: 1, 128>}, {pipeline_mode = #tpu.pipeline_mode<synchronous>, transform_indices = @transform_5, window_bounds = array<i64: 128, 64>}, {pipeline_mode = #tpu.pipeline_mode<synchronous>, transform_indices = @transform_6, window_bounds = array<i64: 1, 64>}, {pipeline_mode = #tpu.pipeline_mode<synchronous>, transform_indices = @transform_7, window_bounds = array<i64: 1, 64>}, {transform_indices = @transform_8, window_bounds = array<i64: 1, 1>}, {transform_indices = @transform_9, window_bounds = array<i64: 8, 1>}]} {
    %c0 = arith.constant 0 : index
    %c0_0 = arith.constant 0 : index
    %0 = vector.load %arg1[%c0, %c0_0] : memref<8x32xbf16, #tpu.memory_space<vmem>>, vector<8x32xbf16>
    %c0_1 = arith.constant 0 : index
    %c0_2 = arith.constant 0 : index
    %1 = vector.load %arg3[%c0_1, %c0_2] : memref<32x128xbf16, #tpu.memory_space<vmem>>, vector<32x128xbf16>
    %cst = arith.constant dense<0.000000e+00> : vector<8x128xf32>
    %2 = tpu.matmul %0, %1, %cst {dimension_numbers = #tpu.dot_dimension_numbers<[1], [0], [0], [1], [0, 0, 1, 1], [], []>} : vector<8x32xbf16>, vector<32x128xbf16>, vector<8x128xf32> -> vector<8x128xf32>
    %c0_3 = arith.constant 0 : index
    %c0_4 = arith.constant 0 : index
    %3 = vector.load %arg2[%c0_3, %c0_4] : memref<8x32xbf16, #tpu.memory_space<vmem>>, vector<8x32xbf16>
    %c0_5 = arith.constant 0 : index
    %c0_6 = arith.constant 0 : index
    %4 = vector.load %arg4[%c0_5, %c0_6] : memref<32x128xbf16, #tpu.memory_space<vmem>>, vector<32x128xbf16>
    %cst_7 = arith.constant dense<0.000000e+00> : vector<8x128xf32>
    %5 = tpu.matmul %3, %4, %cst_7 {dimension_numbers = #tpu.dot_dimension_numbers<[1], [0], [0], [1], [0, 0, 1, 1], [], []>} : vector<8x32xbf16>, vector<32x128xbf16>, vector<8x128xf32> -> vector<8x128xf32>
    %6 = arith.addf %2, %5 : vector<8x128xf32>
    %c0_8 = arith.constant 0 : index
    %c0_9 = arith.constant 0 : index
    %7 = vector.load %arg5[%c0_8, %c0_9] : memref<1x128xf32, #tpu.memory_space<vmem>>, vector<1x128xf32>
    %8 = vector.broadcast %7 : vector<1x128xf32> to vector<8x128xf32>
    %9 = arith.addf %6, %8 : vector<8x128xf32>
    %cst_10 = arith.constant 0.000000e+00 : f32
    %10 = vector.broadcast %cst_10 : f32 to vector<8x128xf32>
    %11 = arith.maximumf %9, %10 : vector<8x128xf32>
    %12 = arith.truncf %11 : vector<8x128xf32> to vector<8x128xbf16>
    %c0_11 = arith.constant 0 : index
    %c0_12 = arith.constant 0 : index
    %13 = vector.load %arg6[%c0_11, %c0_12] : memref<128x64xbf16, #tpu.memory_space<vmem>>, vector<128x64xbf16>
    %cst_13 = arith.constant dense<0.000000e+00> : vector<8x64xf32>
    %14 = tpu.matmul %12, %13, %cst_13 {dimension_numbers = #tpu.dot_dimension_numbers<[1], [0], [0], [1], [0, 0, 1, 1], [], []>} : vector<8x128xbf16>, vector<128x64xbf16>, vector<8x64xf32> -> vector<8x64xf32>
    %c0_14 = arith.constant 0 : index
    %c0_15 = arith.constant 0 : index
    %15 = vector.load %arg7[%c0_14, %c0_15] : memref<1x64xf32, #tpu.memory_space<vmem>>, vector<1x64xf32>
    %16 = vector.broadcast %15 : vector<1x64xf32> to vector<8x64xf32>
    %17 = arith.addf %14, %16 : vector<8x64xf32>
    %cst_16 = arith.constant 0.000000e+00 : f32
    %18 = vector.broadcast %cst_16 : f32 to vector<8x64xf32>
    %19 = arith.maximumf %17, %18 : vector<8x64xf32>
    %c0_17 = arith.constant 0 : index
    %c0_18 = arith.constant 0 : index
    %20 = vector.load %arg8[%c0_17, %c0_18] : memref<1x64xf32, #tpu.memory_space<vmem>>, vector<1x64xf32>
    %21 = vector.broadcast %20 : vector<1x64xf32> to vector<8x64xf32>
    %22 = arith.mulf %19, %21 : vector<8x64xf32>
    %cst_19 = arith.constant dense<0.000000e+00> : vector<8xf32>
    %23 = vector.multi_reduction <add>, %22, %cst_19 [1] : vector<8x64xf32> to vector<8xf32>
    %24 = vector.shape_cast %23 : vector<8xf32> to vector<8x1xf32>
    %c0_20 = arith.constant 0 : index
    %c0_21 = arith.constant 0 : index
    %25 = memref.load %arg9[%c0_20, %c0_21] : memref<1x1xf32, #tpu.memory_space<smem>>
    %26 = vector.broadcast %25 : f32 to vector<8x1xf32>
    %27 = arith.addf %24, %26 : vector<8x1xf32>
    %c0_22 = arith.constant 0 : index
    %c0_23 = arith.constant 0 : index
    %28 = vector.load %arg10[%c0_22, %c0_23] : memref<8x1xf32, #tpu.memory_space<vmem>>, vector<8x1xf32>
    tpu.vector_store %arg10[%c0_22, %c0_23], %27 {strides = array<i32>} : memref<8x1xf32, #tpu.memory_space<vmem>>, vector<8x1xf32>,
    return
  }
  func.func @transform_0(%arg0: i32) -> (i32, i32) {
    %c0_i32 = arith.constant 0 : i32
    %c0_i32_0 = arith.constant 0 : i32
    return %arg0, %c0_i32 : i32, i32
  }
  func.func @transform_1(%arg0: i32) -> (i32, i32) {
    %c0_i32 = arith.constant 0 : i32
    %c0_i32_0 = arith.constant 0 : i32
    return %arg0, %c0_i32 : i32, i32
  }
  func.func @transform_2(%arg0: i32) -> (i32, i32) {
    %c0_i32 = arith.constant 0 : i32
    %c0_i32_0 = arith.constant 0 : i32
    %c0_i32_1 = arith.constant 0 : i32
    return %c0_i32, %c0_i32_0 : i32, i32
  }
  func.func @transform_3(%arg0: i32) -> (i32, i32) {
    %c0_i32 = arith.constant 0 : i32
    %c0_i32_0 = arith.constant 0 : i32
    %c0_i32_1 = arith.constant 0 : i32
    return %c0_i32, %c0_i32_0 : i32, i32
  }
  func.func @transform_4(%arg0: i32) -> (i32, i32) {
    %c0_i32 = arith.constant 0 : i32
    %c0_i32_0 = arith.constant 0 : i32
    %c0_i32_1 = arith.constant 0 : i32
    return %c0_i32, %c0_i32_0 : i32, i32
  }
  func.func @transform_5(%arg0: i32) -> (i32, i32) {
    %c0_i32 = arith.constant 0 : i32
    %c0_i32_0 = arith.constant 0 : i32
    %c0_i32_1 = arith.constant 0 : i32
    return %c0_i32, %c0_i32_0 : i32, i32
  }
  func.func @transform_6(%arg0: i32) -> (i32, i32) {
    %c0_i32 = arith.constant 0 : i32
    %c0_i32_0 = arith.constant 0 : i32
    %c0_i32_1 = arith.constant 0 : i32
    return %c0_i32, %c0_i32_0 : i32, i32
  }
  func.func @transform_7(%arg0: i32) -> (i32, i32) {
    %c0_i32 = arith.constant 0 : i32
    %c0_i32_0 = arith.constant 0 : i32
    %c0_i32_1 = arith.constant 0 : i32
    return %c0_i32, %c0_i32_0 : i32, i32
  }
  func.func @transform_8(%arg0: i32) -> (i32, i32) {
    %c0_i32 = arith.constant 0 : i32
    %c0_i32_0 = arith.constant 0 : i32
    %c0_i32_1 = arith.constant 0 : i32
    return %c0_i32, %c0_i32_0 : i32, i32
  }
  func.func @transform_9(%arg0: i32) -> (i32, i32) {
    %c0_i32 = arith.constant 0 : i32
    %c0_i32_0 = arith.constant 0 : i32
    return %arg0, %c0_i32 : i32, i32
  }
}

</mosaic_0001>

<llo_original>
// kernel: tpu_custom_call.1
$region0: #{tpu_custom_call.1}
  #allocation0 [shape = 'u32[]', space=smem, size = 0x4, offset = 0x4, fixed_abs, tag = 'smem constant byte address 0x4 - core index']
  #allocation1 [shape = 'u32[144,128]{1,0:T(1,128)}', space=vmem, size = 0x12000, scoped, tag = 'internal scratch']
  #allocation2 [shape = 'f32[1,1]{1,0:T(1,128)S(6)}', space=smem, size = 0x200, scoped, tag = 'scoped memory for tpu_custom_call.1']
  %s0 = inlined_call_operand.vmem [shape: bf16[8,32], index: 0, kind: input, shape index: {}]
  %s1 = inlined_call_operand.vmem [shape: bf16[8,32], index: 1, kind: input, shape index: {}]
  %s2 = inlined_call_operand.vmem [shape: bf16[32,128], index: 2, kind: input, shape index: {}]
  %s3 = inlined_call_operand.vmem [shape: bf16[32,128], index: 3, kind: input, shape index: {}]
  %s4 = inlined_call_operand.vmem [shape: f32[1,128], index: 4, kind: input, shape index: {}]
  %s5 = inlined_call_operand.vmem [shape: bf16[128,64], index: 5, kind: input, shape index: {}]
  %s6 = inlined_call_operand.vmem [shape: f32[1,64], index: 6, kind: input, shape index: {}]
  %s7 = inlined_call_operand.vmem [shape: f32[1,64], index: 7, kind: input, shape index: {}]
  %s8 = inlined_call_operand.<no memory space> [shape: f32[1,1], index: 8, kind: input, shape index: {}]
  %s9 = inlined_call_operand.vmem [shape: f32[8,1], index: 9, kind: output, shape index: {}]
  %s10 = sld [smem:[#allocation0]]
  $region46: #{tpu_custom_call.1} parent=0
    _
  %s12 = ssub.s32 1, %s10
  %s13 = scalar_select 0, %s12, %s10
  %14 = sst [smem:[#allocation2]] %s8
  // Predicated region
  $region2: #{tpu_custom_call.1} parent=0 // pred_check
    _
  $region3: #{tpu_custom_call.1} parent=0 // pred_check_branch
    %16 = sbr.rel (0) target = $region5
  $region4: #{tpu_custom_call.1} parent=0 // pred_region
    _
  $region5: #{tpu_custom_call.1} parent=0 // pred_fallthru
    _
  // Predicated region
  $region6: #{tpu_custom_call.1} parent=0 // pred_check
    _
  $region7: #{tpu_custom_call.1} parent=0 // pred_check_branch
    %18 = sbr.rel (0) target = $region9
  $region8: #{tpu_custom_call.1} parent=0 // pred_region
    _
  $region9: #{tpu_custom_call.1} parent=0 // pred_fallthru
    _
  // Predicated region
  $region10: #{tpu_custom_call.1} parent=0 // pred_check
    _
  $region11: #{tpu_custom_call.1} parent=0 // pred_check_branch
    %20 = sbr.rel (0) target = $region13
  $region12: #{tpu_custom_call.1} parent=0 // pred_region
    _
  $region13: #{tpu_custom_call.1} parent=0 // pred_fallthru
    _
  // Predicated region
  $region14: #{tpu_custom_call.1} parent=0 // pred_check
    _
  $region15: #{tpu_custom_call.1} parent=0 // pred_check_branch
    %22 = sbr.rel (0) target = $region17
  $region16: #{tpu_custom_call.1} parent=0 // pred_region
    _
  $region17: #{tpu_custom_call.1} parent=0 // pred_fallthru
    _
  // Predicated region
  $region18: #{tpu_custom_call.1} parent=0 // pred_check
    _
  $region19: #{tpu_custom_call.1} parent=0 // pred_check_branch
    %24 = sbr.rel (0) target = $region21
  $region20: #{tpu_custom_call.1} parent=0 // pred_region
    _
  $region21: #{tpu_custom_call.1} parent=0 // pred_fallthru
    _
  // Predicated region
  $region22: #{tpu_custom_call.1} parent=0 // pred_check
    _
  $region23: #{tpu_custom_call.1} parent=0 // pred_check_branch
    %26 = sbr.rel (0) target = $region25
  $region24: #{tpu_custom_call.1} parent=0 // pred_region
    _
  $region25: #{tpu_custom_call.1} parent=0 // pred_fallthru
    _
  // Predicated region
  $region26: #{tpu_custom_call.1} parent=0 // pred_check
    _
  $region27: #{tpu_custom_call.1} parent=0 // pred_check_branch
    %28 = sbr.rel (0) target = $region29
  $region28: #{tpu_custom_call.1} parent=0 // pred_region
    _
  $region29: #{tpu_custom_call.1} parent=0 // pred_fallthru
    _
  // Predicated region
  $region30: #{tpu_custom_call.1} parent=0 // pred_check
    _
  $region31: #{tpu_custom_call.1} parent=0 // pred_check_branch
    %30 = sbr.rel (0) target = $region33
  $region32: #{tpu_custom_call.1} parent=0 // pred_region
    _
  $region33: #{tpu_custom_call.1} parent=0 // pred_fallthru
    _
  // Predicated region
  $region34: #{tpu_custom_call.1} parent=0 // pred_check
    _
  $region35: #{tpu_custom_call.1} parent=0 // pred_check_branch
    %32 = sbr.rel (0) target = $region37
  $region36: #{tpu_custom_call.1} parent=0 // pred_region
    _
  $region37: #{tpu_custom_call.1} parent=0 // pred_fallthru
    _
  %v34 = vld [vmem:[%s0] sm:$0xf]
  %v35 = vld [vmem:[%s2] sm:$0xf]
  %v36 = vld [vmem:[%s2 + $0x4] sm:$0xf]
  %v37 = vld [vmem:[%s2 + $0x8] sm:$0xf]
  %v38 = vld [vmem:[%s2 + $0xc] sm:$0xf]
  %v39 = vld [vmem:[%s1] sm:$0xf]
  %v40 = vld [vmem:[%s3] sm:$0xf]
  %v41 = vld [vmem:[%s3 + $0x4] sm:$0xf]
  %v42 = vld [vmem:[%s3 + $0x8] sm:$0xf]
  %v43 = vld [vmem:[%s3 + $0xc] sm:$0xf]
  %v48 = vunpack.c.l.b16 %v40
  %v49 = vunpack.c.l.b16 %v41
  %v50 = vunpack.c.l.b16 %v42
  %v51 = vunpack.c.l.b16 %v43
  %v52 = vpack.c.b16 %v49, %v48
  %v53 = vpack.c.b16 %v51, %v50
  %vm56 = vcmask 261120
  %v58 = vsel %vm56, %v39, 0
  %60 = vmatprep.subr.bf16.mxu0 0
  %61 = vmatpush1.bf16.msra.mxu0 0
  %62 = vmatprep.subr.bf16.mxu0 0
  %63 = vmatpush1.bf16.msra.mxu0 0
  %64 = vmatprep.subr.bf16.mxu0 0
  %65 = vmatpush1.bf16.msra.mxu0 0
  %66 = vmatprep.subr.bf16.mxu0 0
  %67 = vmatpush1.bf16.msra.mxu0 0
  %68 = vmatprep.subr.bf16.mxu0 0
  %69 = vmatpush1.bf16.msra.mxu0 0
  %70 = vmatprep.subr.bf16.mxu0 0
  %71 = vmatpush1.bf16.msra.mxu0 0
  %72 = vmatprep.subr.bf16.mxu0 0
  %73 = vmatpush1.bf16.msra.mxu0 %v53
  %74 = vmatprep.subr.bf16.mxu0 0
  %75 = vmatpush1.bf16.msra.mxu0 %v52
  %76 = vmatprep.subr.bf16.mxu0 0
  %77 = vmatpush2.bf16.msra.mxu0 0
  %78 = vmatprep.subr.bf16.mxu0 0
  %79 = vmatpush2.bf16.msra.mxu0 0
  %80 = vmatprep.subr.bf16.mxu0 0
  %81 = vmatpush2.bf16.msra.mxu0 0
  %82 = vmatprep.subr.bf16.mxu0 0
  %83 = vmatpush2.bf16.msra.mxu0 0
  %84 = vmatprep.subr.bf16.mxu0 0
  %85 = vmatpush2.bf16.msra.mxu0 0
  %86 = vmatprep.subr.bf16.mxu0 0
  %87 = vmatpush2.bf16.msra.mxu0 0
  %88 = vmatprep.subr.bf16.mxu0 0
  %89 = vmatpush2.bf16.msra.mxu0 0
  %90 = vmatprep.subr.bf16.mxu0 0
  %91 = vmatpush2.bf16.msra.mxu0 0
  %92 = vmatprep.mubr.bf16.mxu0 0
  %93 = vmatmul.mubr.bf16.gmra.mxu0 %v58
  %v94 = vpop.f32.mrf.mxu0
  %v95 = vadd.f32 0.0, %v94
  %v96 = vpop.f32.mrf.mxu0
  %v97 = vpop.f32.mrf.mxu0
  %v98 = vpop.f32.mrf.mxu0
  %99 = vdwg.mxu0
  %v104 = vunpack.c.l.b16 %v35
  %v105 = vunpack.c.l.b16 %v36
  %v106 = vunpack.c.l.b16 %v37
  %v107 = vunpack.c.l.b16 %v38
  %v108 = vpack.c.b16 %v105, %v104
  %v109 = vpack.c.b16 %v107, %v106
  %v113 = vsel %vm56, %v34, 0
  %115 = vmatprep.subr.bf16.mxu0 0
  %116 = vmatpush1.bf16.msra.mxu0 0
  %117 = vmatprep.subr.bf16.mxu0 0
  %118 = vmatpush1.bf16.msra.mxu0 0
  %119 = vmatprep.subr.bf16.mxu0 0
  %120 = vmatpush1.bf16.msra.mxu0 0
  %121 = vmatprep.subr.bf16.mxu0 0
  %122 = vmatpush1.bf16.msra.mxu0 0
  %123 = vmatprep.subr.bf16.mxu0 0
  %124 = vmatpush1.bf16.msra.mxu0 0
  %125 = vmatprep.subr.bf16.mxu0 0
  %126 = vmatpush1.bf16.msra.mxu0 0
  %127 = vmatprep.subr.bf16.mxu0 0
  %128 = vmatpush1.bf16.msra.mxu0 %v109
  %129 = vmatprep.subr.bf16.mxu0 0
  %130 = vmatpush1.bf16.msra.mxu0 %v108
  %131 = vmatprep.subr.bf16.mxu0 0
  %132 = vmatpush2.bf16.msra.mxu0 0
  %133 = vmatprep.subr.bf16.mxu0 0
  %134 = vmatpush2.bf16.msra.mxu0 0
  %135 = vmatprep.subr.bf16.mxu0 0
  %136 = vmatpush2.bf16.msra.mxu0 0
  %137 = vmatprep.subr.bf16.mxu0 0
  %138 = vmatpush2.bf16.msra.mxu0 0
  %139 = vmatprep.subr.bf16.mxu0 0
  %140 = vmatpush2.bf16.msra.mxu0 0
  %141 = vmatprep.subr.bf16.mxu0 0
  %142 = vmatpush2.bf16.msra.mxu0 0
  %143 = vmatprep.subr.bf16.mxu0 0
  %144 = vmatpush2.bf16.msra.mxu0 0
  %145 = vmatprep.subr.bf16.mxu0 0
  %146 = vmatpush2.bf16.msra.mxu0 0
  %147 = vmatprep.mubr.bf16.mxu0 0
  %148 = vmatmul.mubr.bf16.gmra.mxu0 %v113
  %v149 = vpop.f32.mrf.mxu0
  %v150 = vadd.f32 %v95, %v149
  %v151 = vpop.f32.mrf.mxu0
  %v152 = vpop.f32.mrf.mxu0
  %v153 = vpop.f32.mrf.mxu0
  %154 = vdwg.mxu0
  %v155 = vld [vmem:[%s4] sm:$0x1]
  %v157 = vlaneseq
  %v158 = vshrl.u32 %v157, 7
  %v159 = vsub.s32 0, %v158
  %v160 = vrot.slane %v155, %v159
  %v162 = vadd.f32 %v150, %v160
  %v163 = vmax.f32 %v162, 0.0
  %v164 = vpack.c.bf16 %v163, %v163
  %v165 = vld [vmem:[%s5] sm:$0xf]
  %v166 = vld [vmem:[%s5 + $0x4] sm:$0xf]
  %v167 = vld [vmem:[%s5 + $0x8] sm:$0xf]
  %v168 = vld [vmem:[%s5 + $0xc] sm:$0xf]
  %v169 = vld [vmem:[%s5 + $0x10] sm:$0xf]
  %v170 = vld [vmem:[%s5 + $0x14] sm:$0xf]
  %v171 = vld [vmem:[%s5 + $0x18] sm:$0xf]
  %v172 = vld [vmem:[%s5 + $0x1c] sm:$0xf]
  %v173 = vld [vmem:[%s5 + $0x20] sm:$0xf]
  %v174 = vld [vmem:[%s5 + $0x24] sm:$0xf]
  %v175 = vld [vmem:[%s5 + $0x28] sm:$0xf]
  %v176 = vld [vmem:[%s5 + $0x2c] sm:$0xf]
  %v177 = vld [vmem:[%s5 + $0x30] sm:$0xf]
  %v178 = vld [vmem:[%s5 + $0x34] sm:$0xf]
  %v179 = vld [vmem:[%s5 + $0x38] sm:$0xf]
  %v180 = vld [vmem:[%s5 + $0x3c] sm:$0xf]
  %v181 = vld [vmem:[%s6] sm:$0x1]
  %v183 = vlaneseq
  %v184 = vshrl.u32 %v183, 7
  %v185 = vsub.s32 0, %v184
  %v186 = vrot.slane %v181, %v185
  %v204 = vunpack.c.l.b16 %v165
  %v205 = vunpack.c.l.b16 %v166
  %v206 = vunpack.c.l.b16 %v167
  %v207 = vunpack.c.l.b16 %v168
  %v208 = vunpack.c.l.b16 %v169
  %v209 = vunpack.c.l.b16 %v170
  %v210 = vunpack.c.l.b16 %v171
  %v211 = vunpack.c.l.b16 %v172
  %v212 = vunpack.c.l.b16 %v173
  %v213 = vunpack.c.l.b16 %v174
  %v214 = vunpack.c.l.b16 %v175
  %v215 = vunpack.c.l.b16 %v176
  %v216 = vunpack.c.l.b16 %v177
  %v217 = vunpack.c.l.b16 %v178
  %v218 = vunpack.c.l.b16 %v179
  %v219 = vunpack.c.l.b16 %v180
  %v220 = vpack.c.b16 %v205, %v204
  %v221 = vpack.c.b16 %v207, %v206
  %v222 = vpack.c.b16 %v209, %v208
  %v223 = vpack.c.b16 %v211, %v210
  %v224 = vpack.c.b16 %v213, %v212
  %v225 = vpack.c.b16 %v215, %v214
  %v226 = vpack.c.b16 %v217, %v216
  %v227 = vpack.c.b16 %v219, %v218
  %236 = vmatprep.subr.bf16.mxu0 0
  %237 = vmatpush1.bf16.msra.mxu0 %v227
  %238 = vmatprep.subr.bf16.mxu0 0
  %239 = vmatpush1.bf16.msra.mxu0 %v226
  %240 = vmatprep.subr.bf16.mxu0 0
  %241 = vmatpush1.bf16.msra.mxu0 %v225
  %242 = vmatprep.subr.bf16.mxu0 0
  %243 = vmatpush1.bf16.msra.mxu0 %v224
  %244 = vmatprep.subr.bf16.mxu0 0
  %245 = vmatpush1.bf16.msra.mxu0 %v223
  %246 = vmatprep.subr.bf16.mxu0 0
  %247 = vmatpush1.bf16.msra.mxu0 %v222
  %248 = vmatprep.subr.bf16.mxu0 0
  %249 = vmatpush1.bf16.msra.mxu0 %v221
  %250 = vmatprep.subr.bf16.mxu0 0
  %251 = vmatpush1.bf16.msra.mxu0 %v220
  %252 = vmatprep.subr.bf16.mxu0 0
  %253 = vmatpush2.bf16.msra.mxu0 0
  %254 = vmatprep.subr.bf16.mxu0 0
  %255 = vmatpush2.bf16.msra.mxu0 0
  %256 = vmatprep.subr.bf16.mxu0 0
  %257 = vmatpush2.bf16.msra.mxu0 0
  %258 = vmatprep.subr.bf16.mxu0 0
  %259 = vmatpush2.bf16.msra.mxu0 0
  %260 = vmatprep.subr.bf16.mxu0 0
  %261 = vmatpush2.bf16.msra.mxu0 0
  %262 = vmatprep.subr.bf16.mxu0 0
  %263 = vmatpush2.bf16.msra.mxu0 0
  %264 = vmatprep.subr.bf16.mxu0 0
  %265 = vmatpush2.bf16.msra.mxu0 0
  %266 = vmatprep.subr.bf16.mxu0 0
  %267 = vmatpush2.bf16.msra.mxu0 0
  %268 = vmatprep.mubr.bf16.mxu0 0
  %269 = vmatmul.mubr.bf16.gmra.mxu0 %v164
  %v270 = vpop.f32.mrf.mxu0
  %v271 = vadd.f32 %v186, %v270
  %v272 = vpop.f32.mrf.mxu0
  %v273 = vpop.f32.mrf.mxu0
  %v274 = vpop.f32.mrf.mxu0
  %275 = vdwg.mxu0
  %v276 = vmax.f32 %v271, 0.0
  %v277 = vld [vmem:[%s7] sm:$0x1]
  %v279 = vlaneseq
  %v280 = vshrl.u32 %v279, 7
  %v281 = vsub.s32 0, %v280
  %v282 = vrot.slane %v277, %v281
  %v284 = vmul.f32 %v276, %v282
  %vm285 = vcmask 523264
  %v286 = vsel %vm285, %v284, 0.0
  %287 = vadd.xlane.f32.xlu0 %v286
  %v288 = vpop.xlane.xlu0 %287
  %s289 = sld [smem:[#allocation2]]
  %v290 = vstv %s289
  %v291 = vadd.f32 %v288, %v290
  %vm292 = vcmask 7168
  %293 = vst.msk [vmem:[%s9] sm:$0xff] %vm292, %v291
  // Predicated region
  $region38: #{tpu_custom_call.1} parent=0 // pred_check
    _
  $region39: #{tpu_custom_call.1} parent=0 // pred_check_branch
    %295 = sbr.rel (0) target = $region41
  $region40: #{tpu_custom_call.1} parent=0 // pred_region
    _
  $region41: #{tpu_custom_call.1} parent=0 // pred_fallthru
    _
  // Predicated region
  $region42: #{tpu_custom_call.1} parent=0 // pred_check
    _
  $region43: #{tpu_custom_call.1} parent=0 // pred_check_branch
    %297 = sbr.rel (0) target = $region45
  $region44: #{tpu_custom_call.1} parent=0 // pred_region
    _
  $region45: #{tpu_custom_call.1} parent=0 // pred_fallthru
    _

</llo_original>
